<compile_context>
chip_gen: v7x
topology: tpu7x:2x2x1
jax: 0.10.0
libtpu: 0.0.40
codegen_flags: <defaults>
</compile_context>

<pallas_src>
import functools

import jax
import jax.numpy as jnp
from jax.experimental import pallas as pl
from jax.experimental.pallas import tpu as pltpu


def _round_up(x: int, m: int) -> int:
    return (x + m - 1) // m * m


def _largest_divisor_leq(n: int, cap: int) -> int:
    for d in range(min(n, cap), 0, -1):
        if n % d == 0:
            return d
    return 1


def _grayscale_kernel(x_ref, o_ref, *, inv_c: float):
    # x_ref: (BN, C, S, 128) tile in VMEM; o_ref: (BN, 1, S, 128)
    x = x_ref[...]
    # Channel reduction = C-1 VPU adds over full (8,128) vregs (f32 acc),
    # then a single multiply by the precomputed 1/C.
    acc = jnp.sum(x, axis=1, keepdims=True, dtype=jnp.float32)
    o_ref[...] = (acc * inv_c).astype(o_ref.dtype)


def grayscale(x: jax.Array, *, vmem_buffer_budget_bytes: int = 2 * 1024 * 1024) -> jax.Array:
    """Channel-mean with keepdim. x is NCHW; returns (N, 1, H, W)."""
    n, c, h, w = x.shape
    hw = h * w
    itemsize = jnp.dtype(x.dtype).itemsize
    # Sublane packing multiple: 8 (f32), 16 (bf16), 32 (int8).
    sub = max(8, 32 // itemsize)

    # Lane-dense 4D layout (N, C, HW/128, 128); a pure view when hw % 128 == 0.
    hw128 = _round_up(hw, 128)
    x3 = x.reshape(n, c, hw)
    if hw128 != hw:
        # Only pad when strictly required for the 128-lane re-layout.
        x3 = jnp.pad(x3, ((0, 0), (0, 0), (0, hw128 - hw)))
    nrows = hw128 // 128
    x4 = x3.reshape(n, c, nrows, 128)

    # Batch several images per grid step to amortize the ~0.35 us per-step
    # pipeline overhead when H*W is small.  BN must divide N and fit the budget.
    bn = _largest_divisor_leq(n, 8)
    while bn > 1 and bn * c * min(sub, nrows) * 128 * itemsize > vmem_buffer_budget_bytes:
        bn = _largest_divisor_leq(n, bn - 1)

    # Rows-per-step from a per-buffer byte budget (double-buffered input stays
    # well under every generation's scoped VMEM default, incl. v5e's 16 MiB).
    rows_budget = max(1, vmem_buffer_budget_bytes // (bn * c * 128 * itemsize))
    if nrows <= rows_budget:
        s = nrows                                   # full extent -> always legal
    else:
        s = max(sub, (rows_budget // sub) * sub)    # multiple of the sublane pack

    num_row_steps = -(-nrows // s)
    # Megacore (v7x, 2 TCs): if the whole op is one step but there's enough
    # work, split the row axis so both cores get a "parallel" step.
    if (n // bn) * num_row_steps == 1 and nrows >= 2 * sub:
        s = _round_up(-(-nrows // 2), sub)
        num_row_steps = -(-nrows // s)

    nrows_out = num_row_steps * s                   # padded output rows; tail sliced off
    grid = (n // bn, num_row_steps)

    cost = pl.CostEstimate(
        flops=n * c * nrows_out * 128,
        transcendentals=0,
        bytes_accessed=n * (c + 1) * nrows_out * 128 * itemsize,
    )

    out = pl.pallas_call(
        functools.partial(_grayscale_kernel, inv_c=float(1.0 / c)),
        out_shape=jax.ShapeDtypeStruct((n, 1, nrows_out, 128), x.dtype),
        grid_spec=pltpu.PrefetchScalarGridSpec(
            num_scalar_prefetch=0,
            grid=grid,
            in_specs=[pl.BlockSpec((bn, c, s, 128), lambda i, j: (i, 0, j, 0))],
            out_specs=pl.BlockSpec((bn, 1, s, 128), lambda i, j: (i, 0, j, 0)),
        ),
        compiler_params=pltpu.CompilerParams(
            dimension_semantics=("parallel", "parallel"),
        ),
        cost_estimate=cost,
    )(x4)

    # Drop any row/lane padding and restore NCHW (keepdim -> channel dim of 1).
    return out.reshape(n, 1, nrows_out * 128)[:, :, :hw].reshape(n, 1, h, w)


if __name__ == "__main__":
    key = jax.random.PRNGKey(0)
    x = jax.random.normal(key, (2, 4, 16, 16), dtype=jnp.float32)

    out = jax.block_until_ready(grayscale(x))

    # Sanity check against plain JAX reference.
    ref = jnp.mean(x, axis=1, keepdims=True)
    assert out.shape == (2, 1, 16, 16), out.shape
    assert jnp.allclose(out, ref, rtol=1e-5, atol=1e-6), "mismatch vs reference"

    print("KERNEL_OK")
</pallas_src>

<mosaic_0001>
module attributes {stable_mosaic.version = 11 : i64} {
  func.func @_grayscale_kernel(%arg0: i32, %arg1: i32, %arg2: memref<2x4x2x128xf32, #tpu.memory_space<vmem>>, %arg3: memref<2x1x2x128xf32, #tpu.memory_space<vmem>>) attributes {dimension_semantics = [#tpu.dimension_semantics<parallel>, #tpu.dimension_semantics<parallel>], iteration_bounds = array<i64: 1, 1>, scalar_prefetch = 0 : i64, scratch_operands = 0 : i64, tpu.core_type = #tpu.core_type<tc>, window_params = [{transform_indices = @transform_0, window_bounds = array<i64: 2, 4, 2, 128>}, {transform_indices = @transform_1, window_bounds = array<i64: 2, 1, 2, 128>}]} {
    %c0 = arith.constant 0 : index
    %c0_0 = arith.constant 0 : index
    %c0_1 = arith.constant 0 : index
    %c0_2 = arith.constant 0 : index
    %0 = vector.load %arg2[%c0, %c0_0, %c0_1, %c0_2] : memref<2x4x2x128xf32, #tpu.memory_space<vmem>>, vector<2x4x2x128xf32>
    %cst = arith.constant dense<0.000000e+00> : vector<2x2x128xf32>
    %1 = vector.multi_reduction <add>, %0, %cst [1] : vector<2x4x2x128xf32> to vector<2x2x128xf32>
    %2 = vector.shape_cast %1 : vector<2x2x128xf32> to vector<2x1x2x128xf32>
    %cst_3 = arith.constant 2.500000e-01 : f32
    %3 = vector.broadcast %cst_3 : f32 to vector<2x1x2x128xf32>
    %4 = arith.mulf %2, %3 : vector<2x1x2x128xf32>
    %c0_4 = arith.constant 0 : index
    %c0_5 = arith.constant 0 : index
    %c0_6 = arith.constant 0 : index
    %c0_7 = arith.constant 0 : index
    %5 = vector.load %arg3[%c0_4, %c0_5, %c0_6, %c0_7] : memref<2x1x2x128xf32, #tpu.memory_space<vmem>>, vector<2x1x2x128xf32>
    tpu.vector_store %arg3[%c0_4, %c0_5, %c0_6, %c0_7], %4 {strides = array<i32>} : memref<2x1x2x128xf32, #tpu.memory_space<vmem>>, vector<2x1x2x128xf32>,
    return
  }
  func.func @transform_0(%arg0: i32, %arg1: i32) -> (i32, i32, i32, i32) {
    %c0_i32 = arith.constant 0 : i32
    %c0_i32_0 = arith.constant 0 : i32
    %c0_i32_1 = arith.constant 0 : i32
    return %arg0, %c0_i32, %arg1, %c0_i32_0 : i32, i32, i32, i32
  }
  func.func @transform_1(%arg0: i32, %arg1: i32) -> (i32, i32, i32, i32) {
    %c0_i32 = arith.constant 0 : i32
    %c0_i32_0 = arith.constant 0 : i32
    %c0_i32_1 = arith.constant 0 : i32
    return %arg0, %c0_i32, %arg1, %c0_i32_0 : i32, i32, i32, i32
  }
}

</mosaic_0001>

<llo_original>
// kernel: tpu_custom_call.1
$region0: #{tpu_custom_call.1}
  #allocation0 [shape = 'u32[]', space=smem, size = 0x4, offset = 0x4, fixed_abs, tag = 'smem constant byte address 0x4 - core index']
  #allocation1 [shape = 'u32[144,128]{1,0:T(1,128)}', space=vmem, size = 0x12000, scoped, tag = 'internal scratch']
  %s0 = inlined_call_operand.hbm [shape: f32[2,4,2,128], index: 0, kind: input, shape index: {}]
  %s1 = inlined_call_operand.hbm [shape: f32[2,1,2,128], index: 1, kind: output, shape index: {}]
  %s2 = sld [smem:[#allocation0]]
  $region18: #{tpu_custom_call.1} parent=0
    _
  %s4 = ssub.s32 1, %s2
  %s5 = scalar_select 0, %s4, %s2
  $region1: #{tpu_custom_call.1} parent=0
    #allocation2 [shape = 'u8[8192]{0}', space=vmem, size = 0x2000, scoped, tag = 'input window, operand 0, single buffered']
    #allocation3 [shape = 's32[1]{0}', space=sflag, size = 0x4, scoped, tag = 'scoped memory for tpu_custom_call.1']
    #allocation4 [shape = 's32[1]{0}', space=sflag, size = 0x4, scoped, tag = 'scoped memory for tpu_custom_call.1']
    #allocation5 [shape = 'u8[2048]{0}', space=vmem, size = 0x800, scoped, tag = 'output window, operand 0, single buffered']
    %6 = vsyncpa [#allocation3], 0
    %7 = vsyncpa [#allocation4], 0
    // Predicated region
    $region2: #{tpu_custom_call.1} parent=1 // pred_check
      _
    $region3: #{tpu_custom_call.1} parent=1 // pred_check_branch
      %9 = sbr.rel (0) target = $region5
    $region4: #{tpu_custom_call.1} parent=1 // pred_region
      %s11 = ssub.s32 256, 256
      %12 = vsyncadd [#allocation3], %s11
      %s13 = sshll.u32 [#allocation2], 4
      %s14 = int_to_ptr.vmem [resolvable:$true] %s13
      %19 = dma.hbm_to_vmem [thread:$0]  %s0, 256, %s14, [#allocation3], 32, 32, 2
    $region5: #{tpu_custom_call.1} parent=1 // pred_fallthru
      _
    // Predicated region
    $region6: #{tpu_custom_call.1} parent=1 // pred_check
      _
    $region7: #{tpu_custom_call.1} parent=1 // pred_check_branch
      %21 = sbr.rel (0) target = $region9
    $region8: #{tpu_custom_call.1} parent=1 // pred_region
      %22 = dma.done [#allocation3], 256
    $region9: #{tpu_custom_call.1} parent=1 // pred_fallthru
      _
    %v23 = vld [vmem:[#allocation2] sm:$0x3]
    %v24 = vld [vmem:[#allocation2 + $0x2] sm:$0x3]
    %v25 = vld [vmem:[#allocation2 + $0x4] sm:$0x3]
    %v26 = vld [vmem:[#allocation2 + $0x6] sm:$0x3]
    %v27 = vld [vmem:[#allocation2 + $0x8] sm:$0x3]
    %v28 = vld [vmem:[#allocation2 + $0xa] sm:$0x3]
    %v29 = vld [vmem:[#allocation2 + $0xc] sm:$0x3]
    %v30 = vld [vmem:[#allocation2 + $0xe] sm:$0x3]
    %vm31 = vcmask 1041408
    %v32 = vsel %vm31, %v23, 0.0
    %v33 = vsel %vm31, %v24, 0.0
    %v34 = vadd.f32 %v32, %v33
    %v35 = vsel %vm31, %v25, 0.0
    %v36 = vadd.f32 %v34, %v35
    %v37 = vsel %vm31, %v26, 0.0
    %v38 = vadd.f32 %v36, %v37
    %v39 = vsel %vm31, %v27, 0.0
    %v40 = vsel %vm31, %v28, 0.0
    %v41 = vadd.f32 %v39, %v40
    %v42 = vsel %vm31, %v29, 0.0
    %v43 = vadd.f32 %v41, %v42
    %v44 = vsel %vm31, %v30, 0.0
    %v45 = vadd.f32 %v43, %v44
    %v46 = vmul.f32 %v38, 0.25
    %v47 = vmul.f32 %v45, 0.25
    %48 = vst [vmem:[#allocation5] sm:$0x3] %v46
    %49 = vst [vmem:[#allocation5 + $0x2] sm:$0x3] %v47
    // Predicated region
    $region10: #{tpu_custom_call.1} parent=1 // pred_check
      _
    $region11: #{tpu_custom_call.1} parent=1 // pred_check_branch
      %51 = sbr.rel (0) target = $region13
    $region12: #{tpu_custom_call.1} parent=1 // pred_region
      %s53 = ssub.s32 64, 64
      %54 = vsyncadd [#allocation4], %s53
      %s55 = sshll.u32 [#allocation5], 4
      %s56 = int_to_ptr.vmem [resolvable:$true] %s55
      %61 = dma.vmem_to_hbm [thread:$0]  %s56, 64, %s1, [#allocation4], 32, 32, 2
    $region13: #{tpu_custom_call.1} parent=1 // pred_fallthru
      _
    // Predicated region
    $region14: #{tpu_custom_call.1} parent=1 // pred_check
      _
    $region15: #{tpu_custom_call.1} parent=1 // pred_check_branch
      %63 = sbr.rel (0) target = $region17
    $region16: #{tpu_custom_call.1} parent=1 // pred_region
      %64 = dma.done [#allocation4], 64
    $region17: #{tpu_custom_call.1} parent=1 // pred_fallthru
      _
    %65 = vsyncpa [#allocation3], 1
    %66 = vsyncpa [#allocation4], 1

</llo_original>
